<compile_context>
chip_gen: v6e
topology: v6e:2x2x1
jax: 0.10.0
libtpu: 0.0.40
codegen_flags: <defaults>
</compile_context>

<pallas_src>
import math
import numpy as np
import jax
import jax.numpy as jnp
from jax.experimental import pallas as pl
from jax.experimental.pallas import tpu as pltpu


def upsample_kernel(x_ref, w1_ref, b1_ref, w2_ref, b2_ref, o_ref):
    # x_ref: (bB, N*C, tl) -- feature index f = n*C + c on sublanes, pixels on lanes.
    w1 = w1_ref[...]            # (C, N*C)      bf16, resident
    b1 = b1_ref[...]            # (C, 1)        f32
    w2 = w2_ref[...]            # (C*F*F, C)    bf16, resident
    b2 = b2_ref[...]            # (C*F*F, 1)    f32
    nb = x_ref.shape[0]         # static, small (1..4): unrolled loop
    for i in range(nb):
        # If x is already bf16, this astype is a no-op (preferred on v5e).
        x = x_ref[i].astype(jnp.bfloat16)                                    # (NC, tl)
        # angconv (kernel=A, stride=A) == per-pixel matmul over (c, a1, a2).
        y1 = jnp.dot(w1, x, preferred_element_type=jnp.float32)             # (C, tl)
        y1 = y1 + b1
        y1 = jnp.maximum(y1, 0.1 * y1)                                       # LeakyReLU
        # 1x1 conv -> PixelShuffle(F) -> 3x3 conv folded into one matrix.
        y2 = jnp.dot(w2, y1.astype(jnp.bfloat16),
                     preferred_element_type=jnp.float32)                     # (K_out, tl)
        y2 = y2 + b2
        y2 = jnp.maximum(y2, 0.1 * y2)                                       # LeakyReLU
        o_ref[i] = y2.astype(o_ref.dtype)


def _choose_tiles(B, HW, NC, K_out, C, in_itemsize, out_itemsize,
                  *, vmem_budget=24 * 1024 * 1024, max_lane_tile=16384):
    """Pick (batch block, lane tile) from a per-step VMEM budget.

    Per-step VMEM ~= double-buffered input + double-buffered output + f32
    intermediates.  The budget (24 MiB) stays below the 32 MiB scoped default
    and leaves headroom on v7x's 64 MiB physical VMEM; v5e/v6e (128 MiB) simply
    get the 16384-lane cap.
    """
    def step_bytes(bB, tl):
        return bB * tl * (2 * NC * in_itemsize          # input (double-buffered)
                          + 2 * K_out * out_itemsize    # output (double-buffered)
                          + (C + K_out) * 4)            # f32 intermediates y1/y2

    if HW <= max_lane_tile and step_bytes(1, HW) <= vmem_budget:
        tl = HW                                         # full spatial extent per step
    else:
        tl = min(HW, max_lane_tile)
        tl -= tl % 128                                  # lane-dense stores
        while tl > 128 and step_bytes(1, tl) > vmem_budget:
            tl -= 128
        tl = max(tl, 128)
        if tl > HW:                                     # degenerate tiny-HW guard
            tl = HW
    # No divisibility requirement: grid uses cdiv, the last ragged lane tile is
    # masked (no cross-lane mixing, so garbage lanes are harmless).

    # Batch blocking for small H*W: amortize per-step overhead, but keep >= 2
    # total grid steps when possible so both TensorCores of a 2-TC part (v7x)
    # get work.  TODO(synk): on v7x with B == 1 and tiny H*W, a second parallel
    # grid axis over K_out rows would feed both cores without shrinking tiles.
    n_lane_steps = pl.cdiv(HW, tl)
    bB = 1
    while (bB < B
           and bB * tl < 1024
           and step_bytes(bB + 1, tl) <= vmem_budget
           and pl.cdiv(B, bB + 1) * n_lane_steps >= 2):
        bB += 1
    return bB, tl


def upsample_forward(x, params, A, F, *, out_dtype=jnp.bfloat16,
                     vmem_budget=24 * 1024 * 1024, max_lane_tile=16384):
    """x: (B, N=A*A, C, H, W) -> (B, (A*F)**2, C//A**2, H, W) in out_dtype."""
    W1p, b1p, W23p, b23p = params
    B, N, C, H, W = x.shape
    assert N == A * A and C % (A * A) == 0
    NC = N * C
    K_out = C * F * F
    HW = H * W

    bB, tl = _choose_tiles(B, HW, NC, K_out, C,
                           jnp.dtype(x.dtype).itemsize,
                           jnp.dtype(out_dtype).itemsize,
                           vmem_budget=vmem_budget, max_lane_tile=max_lane_tile)

    # Free reshape only (contiguous-dim merge) -- no HBM transpose of activations.
    x3 = x.reshape(B, NC, HW)

    out3 = pl.pallas_call(
        upsample_kernel,
        out_shape=jax.ShapeDtypeStruct((B, K_out, HW), out_dtype),
        grid_spec=pltpu.PrefetchScalarGridSpec(
            num_scalar_prefetch=0,
            grid=(pl.cdiv(B, bB), pl.cdiv(HW, tl)),
            in_specs=[
                pl.BlockSpec((bB, NC, tl), lambda b, j: (b, 0, j)),
                # Weights/biases: constant index map -> stay resident in VMEM,
                # no re-DMA across grid steps.
                pl.BlockSpec((C, NC), lambda b, j: (0, 0)),
                pl.BlockSpec((C, 1), lambda b, j: (0, 0)),
                pl.BlockSpec((K_out, C), lambda b, j: (0, 0)),
                pl.BlockSpec((K_out, 1), lambda b, j: (0, 0)),
            ],
            out_specs=pl.BlockSpec((bB, K_out, tl), lambda b, j: (b, 0, j)),
        ),
        compiler_params=pltpu.CompilerParams(
            dimension_semantics=("parallel", "parallel")),
    )(x3, W1p, b1p, W23p, b23p)

    # Output rows were permuted at fold time into (m, c') order, so the module's
    # final view/transpose chain is just this free reshape.
    A_out = A * F
    return out3.reshape(B, A_out * A_out, C // (A * A), H, W)


def init_params(key, C, A, F):
    """Deterministic Conv2d-style (uniform +-1/sqrt(fan_in)) parameter init."""
    k1, k2, k3, k4, k5, k6 = jax.random.split(key, 6)
    s1 = 1.0 / math.sqrt(C * A * A)
    W1 = jax.random.uniform(k1, (C, C, A, A), jnp.float32, -s1, s1)          # angconv
    b1 = jax.random.uniform(k2, (C,), jnp.float32, -s1, s1)
    s2 = 1.0 / math.sqrt(C)
    W2 = jax.random.uniform(k3, (C * F * F, C, 1, 1), jnp.float32, -s2, s2)  # 1x1
    b2 = jax.random.uniform(k4, (C * F * F,), jnp.float32, -s2, s2)
    s3 = 1.0 / math.sqrt(C * 9)
    W3 = jax.random.uniform(k5, (C, C, 3, 3), jnp.float32, -s3, s3)          # 3x3
    b3 = jax.random.uniform(k6, (C,), jnp.float32, -s3, s3)
    return W1, b1, W2, b2, W3, b3


def fold_params(W1, b1, W2, b2, W3, b3, C, A, F):
    """Fold layout permutations + the W2*W3 product into two small matrices (host, f64).

    * W1p (C, A*A*C): angconv weights with the reduction axis reordered to match
      the natural HBM feature order f = n*C + c (n = a1*A + a2) of
      x.reshape(B, N*C, HW).
    * W23p (C*F*F, C) / b23p: exact fold of 1x1 conv -> PixelShuffle(F) -> 3x3
      conv (no nonlinearity in between; the 3x3 conv acts on each pixel's own
      FxF shuffled block with zero padding, exactly as in the module), with the
      OUTPUT rows permuted into (m, c') order so the module's final
      view/transpose becomes a free reshape in the wrapper.
    """
    N = A * A
    K_out = C * F * F
    A_out2 = (A * F) ** 2
    C_out = C // N

    W1np = np.asarray(W1, np.float64)                        # [o, c, a1, a2]
    W1p = W1np.transpose(0, 2, 3, 1).reshape(C, N * C)       # col = (a1*A+a2)*C + c
    b1p = np.asarray(b1, np.float64).reshape(C, 1)

    W2np = np.asarray(W2, np.float64).reshape(K_out, C)      # row k = ic*F*F + p*F + q
    b2np = np.asarray(b2, np.float64)
    W3np = np.asarray(W3, np.float64)                        # [o, ic, 3, 3]
    b3np = np.asarray(b3, np.float64)

    W23 = np.zeros((K_out, C), np.float64)
    b23 = np.zeros((K_out,), np.float64)
    for o in range(C):
        for i in range(F):
            for j in range(F):
                ok = o * F * F + i * F + j
                acc_w = np.zeros((C,), np.float64)
                acc_b = 0.0
                for ic in range(C):
                    for p in range(F):
                        for q in range(F):
                            di, dj = p - i + 1, q - j + 1
                            if 0 <= di < 3 and 0 <= dj < 3:
                                w3 = W3np[o, ic, di, dj]
                                k = ic * F * F + p * F + q
                                acc_w += w3 * W2np[k]
                                acc_b += w3 * b2np[k]
                W23[ok] = acc_w
                b23[ok] = acc_b + b3np[o]

    # Output-row permutation: module per-pixel feature index ok = c'*A_out^2 + m;
    # kernel rows are ordered r = m*C_out + c'.
    perm = np.empty((K_out,), np.int64)
    for r in range(K_out):
        m, cp = divmod(r, C_out)
        perm[r] = cp * A_out2 + m
    W23p = W23[perm]
    b23p = b23[perm].reshape(K_out, 1)

    return (jnp.asarray(W1p, jnp.bfloat16), jnp.asarray(b1p, jnp.float32),
            jnp.asarray(W23p, jnp.bfloat16), jnp.asarray(b23p, jnp.float32))


def reference(x, W1, b1, W2, b2, W3, b3, A, F):
    """Pure-JAX f32 reference mirroring the PyTorch forward step by step."""
    B, N, C, H, Wd = x.shape
    M = B * H * Wd
    X4 = jnp.transpose(x, (0, 3, 4, 2, 1)).reshape(M, C, A, A)
    y1 = jnp.einsum('mcpq,ocpq->mo', X4, W1) + b1
    y1 = jnp.where(y1 >= 0, y1, 0.1 * y1)
    y2 = jnp.einsum('mc,oc->mo', y1, W2.reshape(C * F * F, C)) + b2
    shuf = y2.reshape(M, C, F, F)                      # PixelShuffle from 1x1 conv
    pad = jnp.pad(shuf, ((0, 0), (0, 0), (1, 1), (1, 1)))
    y3 = jnp.zeros((M, C, F, F), jnp.float32)
    for di in range(3):
        for dj in range(3):
            y3 = y3 + jnp.einsum('mcij,oc->moij',
                                 pad[:, :, di:di + F, dj:dj + F], W3[:, :, di, dj])
    y3 = y3 + b3[None, :, None, None]
    y3 = jnp.where(y3 >= 0, y3, 0.1 * y3)
    out = y3.reshape(M, C * F * F).reshape(B, H, Wd, C // (A * A), A * A * F * F)
    return jnp.transpose(out, (0, 4, 3, 1, 2))


if __name__ == "__main__":
    B, C, A, F, H, W = 2, 16, 2, 2, 16, 16     # channel=16, angular_in=2, factor=2
    N = A * A
    key = jax.random.PRNGKey(0)
    kx, kp = jax.random.split(key)
    x = jax.random.normal(kx, (B, N, C, H, W), jnp.float32)

    raw = init_params(kp, C, A, F)
    params = fold_params(*raw, C=C, A=A, F=F)

    out = jax.block_until_ready(upsample_forward(x, params, A, F))
    assert out.shape == (B, (A * F) ** 2, C // (A * A), H, W), out.shape

    ref = reference(x, *raw, A=A, F=F)
    # bf16 weights/activations/output -> loosened tolerance vs the f32 reference.
    np.testing.assert_allclose(np.asarray(out).astype(np.float32), np.asarray(ref),
                               rtol=2e-2, atol=2e-2)
    print("KERNEL_OK")
</pallas_src>

<mosaic_0001>
module attributes {stable_mosaic.version = 11 : i64} {
  func.func @upsample_kernel(%arg0: i32, %arg1: i32, %arg2: memref<1x64x256xf32, #tpu.memory_space<vmem>>, %arg3: memref<16x64xbf16, #tpu.memory_space<vmem>>, %arg4: memref<16x1xf32, #tpu.memory_space<vmem>>, %arg5: memref<64x16xbf16, #tpu.memory_space<vmem>>, %arg6: memref<64x1xf32, #tpu.memory_space<vmem>>, %arg7: memref<1x64x256xbf16, #tpu.memory_space<vmem>>) attributes {dimension_semantics = [#tpu.dimension_semantics<parallel>, #tpu.dimension_semantics<parallel>], iteration_bounds = array<i64: 2, 1>, scalar_prefetch = 0 : i64, scratch_operands = 0 : i64, tpu.core_type = #tpu.core_type<tc>, window_params = [{transform_indices = @transform_0, window_bounds = array<i64: 1, 64, 256>}, {pipeline_mode = #tpu.pipeline_mode<synchronous>, transform_indices = @transform_1, window_bounds = array<i64: 16, 64>}, {pipeline_mode = #tpu.pipeline_mode<synchronous>, transform_indices = @transform_2, window_bounds = array<i64: 16, 1>}, {pipeline_mode = #tpu.pipeline_mode<synchronous>, transform_indices = @transform_3, window_bounds = array<i64: 64, 16>}, {pipeline_mode = #tpu.pipeline_mode<synchronous>, transform_indices = @transform_4, window_bounds = array<i64: 64, 1>}, {transform_indices = @transform_5, window_bounds = array<i64: 1, 64, 256>}]} {
    %c0 = arith.constant 0 : index
    %c0_0 = arith.constant 0 : index
    %0 = vector.load %arg3[%c0, %c0_0] : memref<16x64xbf16, #tpu.memory_space<vmem>>, vector<16x64xbf16>
    %c0_1 = arith.constant 0 : index
    %c0_2 = arith.constant 0 : index
    %1 = vector.load %arg4[%c0_1, %c0_2] : memref<16x1xf32, #tpu.memory_space<vmem>>, vector<16x1xf32>
    %c0_3 = arith.constant 0 : index
    %c0_4 = arith.constant 0 : index
    %2 = vector.load %arg5[%c0_3, %c0_4] : memref<64x16xbf16, #tpu.memory_space<vmem>>, vector<64x16xbf16>
    %c0_5 = arith.constant 0 : index
    %c0_6 = arith.constant 0 : index
    %3 = vector.load %arg6[%c0_5, %c0_6] : memref<64x1xf32, #tpu.memory_space<vmem>>, vector<64x1xf32>
    %c0_7 = arith.constant 0 : index
    %c0_8 = arith.constant 0 : index
    %c0_9 = arith.constant 0 : index
    %4 = vector.load %arg2[%c0_7, %c0_8, %c0_9] : memref<1x64x256xf32, #tpu.memory_space<vmem>>, vector<1x64x256xf32>
    %5 = vector.shape_cast %4 : vector<1x64x256xf32> to vector<64x256xf32>
    %6 = arith.truncf %5 : vector<64x256xf32> to vector<64x256xbf16>
    %cst = arith.constant dense<0.000000e+00> : vector<16x256xf32>
    %7 = tpu.matmul %0, %6, %cst {dimension_numbers = #tpu.dot_dimension_numbers<[1], [0], [0], [1], [0, 0, 1, 1], [], []>} : vector<16x64xbf16>, vector<64x256xbf16>, vector<16x256xf32> -> vector<16x256xf32>
    %8 = vector.broadcast %1 : vector<16x1xf32> to vector<16x256xf32>
    %9 = arith.addf %7, %8 : vector<16x256xf32>
    %cst_10 = arith.constant 1.000000e-01 : f32
    %10 = vector.broadcast %cst_10 : f32 to vector<16x256xf32>
    %11 = arith.mulf %10, %9 : vector<16x256xf32>
    %12 = arith.maximumf %9, %11 : vector<16x256xf32>
    %13 = arith.truncf %12 : vector<16x256xf32> to vector<16x256xbf16>
    %cst_11 = arith.constant dense<0.000000e+00> : vector<64x256xf32>
    %14 = tpu.matmul %2, %13, %cst_11 {dimension_numbers = #tpu.dot_dimension_numbers<[1], [0], [0], [1], [0, 0, 1, 1], [], []>} : vector<64x16xbf16>, vector<16x256xbf16>, vector<64x256xf32> -> vector<64x256xf32>
    %15 = vector.broadcast %3 : vector<64x1xf32> to vector<64x256xf32>
    %16 = arith.addf %14, %15 : vector<64x256xf32>
    %cst_12 = arith.constant 1.000000e-01 : f32
    %17 = vector.broadcast %cst_12 : f32 to vector<64x256xf32>
    %18 = arith.mulf %17, %16 : vector<64x256xf32>
    %19 = arith.maximumf %16, %18 : vector<64x256xf32>
    %20 = arith.truncf %19 : vector<64x256xf32> to vector<64x256xbf16>
    %c0_13 = arith.constant 0 : index
    %c0_14 = arith.constant 0 : index
    %c0_15 = arith.constant 0 : index
    %21 = vector.load %arg7[%c0_13, %c0_14, %c0_15] : memref<1x64x256xbf16, #tpu.memory_space<vmem>>, vector<1x64x256xbf16>
    %22 = vector.shape_cast %21 : vector<1x64x256xbf16> to vector<64x256xbf16>
    %23 = vector.shape_cast %20 : vector<64x256xbf16> to vector<1x64x256xbf16>
    tpu.vector_store %arg7[%c0_13, %c0_14, %c0_15], %23 {strides = array<i32>} : memref<1x64x256xbf16, #tpu.memory_space<vmem>>, vector<1x64x256xbf16>,
    return
  }
  func.func @transform_0(%arg0: i32, %arg1: i32) -> (i32, i32, i32) {
    %c0_i32 = arith.constant 0 : i32
    %c0_i32_0 = arith.constant 0 : i32
    return %arg0, %c0_i32, %arg1 : i32, i32, i32
  }
  func.func @transform_1(%arg0: i32, %arg1: i32) -> (i32, i32) {
    %c0_i32 = arith.constant 0 : i32
    %c0_i32_0 = arith.constant 0 : i32
    %c0_i32_1 = arith.constant 0 : i32
    return %c0_i32, %c0_i32_0 : i32, i32
  }
  func.func @transform_2(%arg0: i32, %arg1: i32) -> (i32, i32) {
    %c0_i32 = arith.constant 0 : i32
    %c0_i32_0 = arith.constant 0 : i32
    %c0_i32_1 = arith.constant 0 : i32
    return %c0_i32, %c0_i32_0 : i32, i32
  }
  func.func @transform_3(%arg0: i32, %arg1: i32) -> (i32, i32) {
    %c0_i32 = arith.constant 0 : i32
    %c0_i32_0 = arith.constant 0 : i32
    %c0_i32_1 = arith.constant 0 : i32
    return %c0_i32, %c0_i32_0 : i32, i32
  }
  func.func @transform_4(%arg0: i32, %arg1: i32) -> (i32, i32) {
    %c0_i32 = arith.constant 0 : i32
    %c0_i32_0 = arith.constant 0 : i32
    %c0_i32_1 = arith.constant 0 : i32
    return %c0_i32, %c0_i32_0 : i32, i32
  }
  func.func @transform_5(%arg0: i32, %arg1: i32) -> (i32, i32, i32) {
    %c0_i32 = arith.constant 0 : i32
    %c0_i32_0 = arith.constant 0 : i32
    return %arg0, %c0_i32, %arg1 : i32, i32, i32
  }
}

</mosaic_0001>

<llo_original>
// kernel: tpu_custom_call.1
$region0: #{tpu_custom_call.1}
  #allocation0 [shape = 'u32[]', space=smem, size = 0x4, offset = 0x4, fixed_abs, tag = 'smem constant byte address 0x4 - core index']
  #allocation1 [shape = 'u32[144,128]{1,0:T(1,128)}', space=vmem, size = 0x12000, scoped, tag = 'internal scratch']
  %s0 = inlined_call_operand.hbm [shape: f32[2,64,256], index: 0, kind: input, shape index: {}]
  %s1 = inlined_call_operand.vmem [shape: bf16[16,64], index: 1, kind: input, shape index: {}]
  %s2 = inlined_call_operand.vmem [shape: f32[16,1], index: 2, kind: input, shape index: {}]
  %s3 = inlined_call_operand.vmem [shape: bf16[64,16], index: 3, kind: input, shape index: {}]
  %s4 = inlined_call_operand.vmem [shape: f32[64,1], index: 4, kind: input, shape index: {}]
  %s5 = inlined_call_operand.hbm [shape: bf16[2,64,256], index: 5, kind: output, shape index: {}]
  %s6 = sld [smem:[#allocation0]]
  $region57: #{tpu_custom_call.1} parent=0
    _
  %s8 = ssub.s32 1, %s6
  %s9 = scalar_select 0, %s8, %s6
  $region1: #{tpu_custom_call.1} parent=0
    #allocation2 [shape = 'u8[131072]{0}', space=vmem, size = 0x20000, scoped, tag = 'input window, operand 0']
    #allocation3 [shape = 's32[2]{0}', space=sflag, size = 0x8, scoped, tag = 'scoped memory for tpu_custom_call.1']
    #allocation4 [shape = 's32[2]{0}', space=sflag, size = 0x8, scoped, tag = 'scoped memory for tpu_custom_call.1']
    #allocation5 [shape = 'u8[65536]{0}', space=vmem, size = 0x10000, scoped, tag = 'output window, operand 0']
    %10 = vsyncpa [#allocation3], 0
    %s11 = scalar_lea.sflag [#allocation3], 1
    %12 = vsyncpa %s11, 0
    %13 = vsyncpa [#allocation4], 0
    %s14 = scalar_lea.sflag [#allocation4], 1
    %15 = vsyncpa %s14, 0
    loop: start=0, step=1, limit=4
    $region2: #{tpu_custom_call.1} parent=1 // loop_pre_header
      _
    $region3: #{tpu_custom_call.1} parent=1 // loop_header
      %s17 = sphi 0, %s21
      %p18 = scmp.ge.s32.totalorder %s17, 4
      %s24 = sphi 0, %s36
      %s25 = sphi 0, %s32
      %s26 = sphi 0, %s24
      %s27 = sphi 0, %s25
      %s28 = sphi 0, %s26
      %s29 = sphi 0, %s27
      %s41 = sphi 0, %s43
      %s44 = sphi 0, %s41
      %s45 = sphi 0, %s44
      %s61 = sphi 0, %s45
      %s65 = sphi 0, %s65
      %s67 = sphi 0, %s65
      %s68 = sphi 0, %s67
      %s82 = sphi 0, %s68
      %s86 = sphi 0, %s86
      %s88 = sphi 0, %s86
      %s89 = sphi 0, %s88
      %s103 = sphi 0, %s89
      %s107 = sphi 0, %s107
      %s109 = sphi 0, %s107
      %s110 = sphi 0, %s109
      %s124 = sphi 0, %s110
      %s128 = sphi 0, %s128
      %s130 = sphi 0, %s128
      %s131 = sphi 0, %s130
      %s145 = sphi 0, %s131
      %s153 = sphi 0, %s155
      %s156 = sphi 0, %s153
      %s157 = sphi 0, %s156
      %s173 = sphi 0, %s157
    $region4: #{tpu_custom_call.1} parent=1 // loop_header_branch
      %20 = sbr.rel (%p18) target = $region8
    $region5: #{tpu_custom_call.1} parent=1 // loop_body
      %s22 = ssub.s32 %s17, 1
      %s23 = ssub.s32 %s17, 2
      %s30 = sadd.s32 1, %s25
      %p31 = scmp.ge.s32.totalorder %s30, 1
      %s32 = scalar_select %p31, 0, %s30
      %s33 = sadd.s32 1, %s24
      %s34 = scalar_select %p31, %s33, %s24
      %p35 = scmp.ge.s32.totalorder %s34, 2
      %s36 = scalar_select %p35, 0, %s34
      %s37 = ssub.s32 %s24, %s36
      %s38 = ssub.s32 %s25, %s32
      %s39 = sor.u32 %s37, %s38
      %p40 = scmp.eq.s32.totalorder %s39, 0
      %s42 = sadd.s32 %s41, 1
      %s43 = scalar_select %p40, %s41, %s42
      %p46 = pneg %p40
      %p47 = scmp.eq.s32.totalorder %s17, 1
      %p48 = por %p46, %p47
      %p49 = scmp.ne.s32.totalorder %s41, %s44
      %p50 = scmp.eq.s32.totalorder %s17, 0
      %p51 = por %p49, %p50
      %p52 = scmp.ne.s32.totalorder %s41, %s44
      %p53 = scmp.eq.s32.totalorder %s22, 1
      %p54 = por %p52, %p53
      %p55 = scmp.ne.s32.totalorder %s44, %s45
      %p56 = scmp.eq.s32.totalorder %s22, 0
      %p57 = por %p55, %p56
      %p58 = scmp.ne.s32.totalorder %s44, %s45
      %p59 = scmp.eq.s32.totalorder %s23, 1
      %p60 = por %p58, %p59
      %p62 = scmp.ne.s32.totalorder %s45, %s61
      %p63 = scmp.eq.s32.totalorder %s23, 0
      %p64 = por %p62, %p63
      %s66 = sadd.s32 %s65, 1
      %p69 = scmp.eq.s32.totalorder %s17, 1
      %p70 = scmp.ne.s32.totalorder %s65, %s67
      %p71 = scmp.eq.s32.totalorder %s17, 0
      %p72 = por %p70, %p71
      %p73 = scmp.ne.s32.totalorder %s65, %s67
      %p74 = scmp.eq.s32.totalorder %s22, 1
      %p75 = por %p73, %p74
      %p76 = scmp.ne.s32.totalorder %s67, %s68
      %p77 = scmp.eq.s32.totalorder %s22, 0
      %p78 = por %p76, %p77
      %p79 = scmp.ne.s32.totalorder %s67, %s68
      %p80 = scmp.eq.s32.totalorder %s23, 1
      %p81 = por %p79, %p80
      %p83 = scmp.ne.s32.totalorder %s68, %s82
      %p84 = scmp.eq.s32.totalorder %s23, 0
      %p85 = por %p83, %p84
      %s87 = sadd.s32 %s86, 1
      %p90 = scmp.eq.s32.totalorder %s17, 1
      %p91 = scmp.ne.s32.totalorder %s86, %s88
      %p92 = scmp.eq.s32.totalorder %s17, 0
      %p93 = por %p91, %p92
      %p94 = scmp.ne.s32.totalorder %s86, %s88
      %p95 = scmp.eq.s32.totalorder %s22, 1
      %p96 = por %p94, %p95
      %p97 = scmp.ne.s32.totalorder %s88, %s89
      %p98 = scmp.eq.s32.totalorder %s22, 0
      %p99 = por %p97, %p98
      %p100 = scmp.ne.s32.totalorder %s88, %s89
      %p101 = scmp.eq.s32.totalorder %s23, 1
      %p102 = por %p100, %p101
      %p104 = scmp.ne.s32.totalorder %s89, %s103
      %p105 = scmp.eq.s32.totalorder %s23, 0
      %p106 = por %p104, %p105
      %s108 = sadd.s32 %s107, 1
      %p111 = scmp.eq.s32.totalorder %s17, 1
      %p112 = scmp.ne.s32.totalorder %s107, %s109
      %p113 = scmp.eq.s32.totalorder %s17, 0
      %p114 = por %p112, %p113
      %p115 = scmp.ne.s32.totalorder %s107, %s109
      %p116 = scmp.eq.s32.totalorder %s22, 1
      %p117 = por %p115, %p116
      %p118 = scmp.ne.s32.totalorder %s109, %s110
      %p119 = scmp.eq.s32.totalorder %s22, 0
      %p120 = por %p118, %p119
      %p121 = scmp.ne.s32.totalorder %s109, %s110
      %p122 = scmp.eq.s32.totalorder %s23, 1
      %p123 = por %p121, %p122
      %p125 = scmp.ne.s32.totalorder %s110, %s124
      %p126 = scmp.eq.s32.totalorder %s23, 0
      %p127 = por %p125, %p126
      %s129 = sadd.s32 %s128, 1
      %p132 = scmp.eq.s32.totalorder %s17, 1
      %p133 = scmp.ne.s32.totalorder %s128, %s130
      %p134 = scmp.eq.s32.totalorder %s17, 0
      %p135 = por %p133, %p134
      %p136 = scmp.ne.s32.totalorder %s128, %s130
      %p137 = scmp.eq.s32.totalorder %s22, 1
      %p138 = por %p136, %p137
      %p139 = scmp.ne.s32.totalorder %s130, %s131
      %p140 = scmp.eq.s32.totalorder %s22, 0
      %p141 = por %p139, %p140
      %p142 = scmp.ne.s32.totalorder %s130, %s131
      %p143 = scmp.eq.s32.totalorder %s23, 1
      %p144 = por %p142, %p143
      %p146 = scmp.ne.s32.totalorder %s131, %s145
      %p147 = scmp.eq.s32.totalorder %s23, 0
      %p148 = por %p146, %p147
      %s149 = ssub.s32 %s24, %s36
      %s150 = ssub.s32 %s25, %s32
      %s151 = sor.u32 %s149, %s150
      %p152 = scmp.eq.s32.totalorder %s151, 0
      %s154 = sadd.s32 %s153, 1
      %s155 = scalar_select %p152, %s153, %s154
      %p158 = pneg %p152
      %p159 = scmp.eq.s32.totalorder %s17, 1
      %p160 = por %p158, %p159
      %p161 = scmp.ne.s32.totalorder %s153, %s156
      %p162 = scmp.eq.s32.totalorder %s17, 0
      %p163 = por %p161, %p162
      %p164 = scmp.ne.s32.totalorder %s153, %s156
      %p165 = scmp.eq.s32.totalorder %s22, 1
      %p166 = por %p164, %p165
      %p167 = scmp.ne.s32.totalorder %s156, %s157
      %p168 = scmp.eq.s32.totalorder %s22, 0
      %p169 = por %p167, %p168
      %p170 = scmp.ne.s32.totalorder %s156, %s157
      %p171 = scmp.eq.s32.totalorder %s23, 1
      %p172 = por %p170, %p171
      %p174 = scmp.ne.s32.totalorder %s157, %s173
      %p175 = scmp.eq.s32.totalorder %s23, 0
      %p176 = por %p174, %p175
      %p177 = scmp.le.s32.totalorder 1, %s17
      %p178 = scmp.lt.s32.totalorder %s17, 3
      %p179 = pnand %p177, %p178
      %p180 = pneg %p179
      // Predicated region
      $region9: #{tpu_custom_call.1} parent=5 // pred_check
        _
      $region10: #{tpu_custom_call.1} parent=5 // pred_check_branch
        %182 = sbr.rel (%p179) target = $region12
      $region11: #{tpu_custom_call.1} parent=5 // pred_region
        %s183 = ssub.s32 %s17, 1
        // Predicated region
        $region13: #{tpu_custom_call.1} parent=11 // pred_check
          %p184 = pneg %p78
        $region14: #{tpu_custom_call.1} parent=11 // pred_check_branch
          %186 = sbr.rel (%p184) target = $region16
        $region15: #{tpu_custom_call.1} parent=11 // pred_region
          _
        $region16: #{tpu_custom_call.1} parent=11 // pred_fallthru
          _
        // Predicated region
        $region17: #{tpu_custom_call.1} parent=11 // pred_check
          %p187 = pneg %p99
        $region18: #{tpu_custom_call.1} parent=11 // pred_check_branch
          %189 = sbr.rel (%p187) target = $region20
        $region19: #{tpu_custom_call.1} parent=11 // pred_region
          _
        $region20: #{tpu_custom_call.1} parent=11 // pred_fallthru
          _
        // Predicated region
        $region21: #{tpu_custom_call.1} parent=11 // pred_check
          %p190 = pneg %p120
        $region22: #{tpu_custom_call.1} parent=11 // pred_check_branch
          %192 = sbr.rel (%p190) target = $region24
        $region23: #{tpu_custom_call.1} parent=11 // pred_region
          _
        $region24: #{tpu_custom_call.1} parent=11 // pred_fallthru
          _
        // Predicated region
        $region25: #{tpu_custom_call.1} parent=11 // pred_check
          %p193 = pneg %p141
        $region26: #{tpu_custom_call.1} parent=11 // pred_check_branch
          %195 = sbr.rel (%p193) target = $region28
        $region27: #{tpu_custom_call.1} parent=11 // pred_region
          _
        $region28: #{tpu_custom_call.1} parent=11 // pred_fallthru
          _
      $region12: #{tpu_custom_call.1} parent=5 // pred_fallthru
        _
      %p196 = scmp.lt.s32.totalorder %s17, 2
      // Predicated region
      $region29: #{tpu_custom_call.1} parent=5 // pred_check
        %p197 = pneg %p196
      $region30: #{tpu_custom_call.1} parent=5 // pred_check_branch
        %199 = sbr.rel (%p197) target = $region32
      $region31: #{tpu_custom_call.1} parent=5 // pred_region
        // Predicated region
        $region33: #{tpu_custom_call.1} parent=31 // pred_check
          %p200 = pneg %p51
        $region34: #{tpu_custom_call.1} parent=31 // pred_check_branch
          %202 = sbr.rel (%p200) target = $region36
        $region35: #{tpu_custom_call.1} parent=31 // pred_region
          %s203 = sand.u32 %s41, 1
          %s204 = scalar_lea.sflag [#allocation3], %s203
          %s205 = sand.u32 %s41, 1
          %s206 = smul.addr %s205, 128
          %s207 = scalar_lea.vmem [#allocation2], %s206
          %s208 = smul.u32 2, %s25
          %s210 = ssub.s32 2048, 2048
          %211 = vsyncadd %s204, %s210
          %s212 = smul.addr %s24, 16
          %s213 = sadd.s32 %s208, %s212
          %s214 = smul.addr %s213, 128
          %s215 = scalar_lea.hbm %s0, %s214
          %s216 = sshll.u32 %s207, 4
          %s217 = int_to_ptr.vmem [resolvable:$true] %s216
          %222 = dma.hbm_to_vmem [thread:$0]  %s215, 2048, %s217, %s204, 256, 256, 16
        $region36: #{tpu_custom_call.1} parent=31 // pred_fallthru
          _
      $region32: #{tpu_custom_call.1} parent=5 // pred_fallthru
        _
      %p223 = scmp.le.s32.totalorder 1, %s17
      %p224 = scmp.lt.s32.totalorder %s17, 3
      %p225 = pnand %p223, %p224
      %p226 = pneg %p225
      // Predicated region
      $region37: #{tpu_custom_call.1} parent=5 // pred_check
        _
      $region38: #{tpu_custom_call.1} parent=5 // pred_check_branch
        %228 = sbr.rel (%p225) target = $region40
      $region39: #{tpu_custom_call.1} parent=5 // pred_region
        %s229 = ssub.s32 %s17, 1
        %s230 = sand.u32 %s44, 1
        %s231 = scalar_lea.sflag [#allocation3], %s230
        %s232 = sand.u32 %s44, 1
        %s233 = smul.addr %s232, 128
        %s234 = scalar_lea.vmem [#allocation2], %s233
        // Predicated region
        $region41: #{tpu_custom_call.1} parent=39 // pred_check
          %p235 = pneg %p57
        $region42: #{tpu_custom_call.1} parent=39 // pred_check_branch
          %237 = sbr.rel (%p235) target = $region44
        $region43: #{tpu_custom_call.1} parent=39 // pred_region
          %238 = dma.done %s231, 2048
        $region44: #{tpu_custom_call.1} parent=39 // pred_fallthru
          _
        %s239 = sand.u32 %s44, 1
        %s240 = scalar_lea.sflag [#allocation3], %s239
        %s241 = sand.u32 %s44, 1
        %s242 = smul.addr %s241, 128
        %s243 = scalar_lea.vmem [#allocation2], %s242
        %p244 = pneg %p57
        %p245 = pneg %p54
        %p246 = pneg %p78
        %p247 = pneg %p75
        %p248 = pneg %p99
        %p249 = pneg %p96
        %p250 = pneg %p120
        %p251 = pneg %p117
        %p252 = pneg %p141
        %p253 = pneg %p138
        %p254 = pneg %p169
        %p255 = pneg %p166
        %s256 = sand.u32 %s156, 1
        %s257 = scalar_lea.sflag [#allocation4], %s256
        %s258 = sand.u32 %s156, 1
        %s259 = smul.addr %s258, 64
        %s260 = scalar_lea.vmem [#allocation5], %s259
        %s261 = smul.u32 2, %s27
        %s262 = smul.u32 2, %s27
        %v264 = vld [vmem:[%s1] sm:$0xf]
        %v265 = vld [vmem:[%s1 + $0x4] sm:$0xf]
        %v266 = vld [vmem:[%s2] sm:$0xff]
        %v267 = vld [vmem:[%s2 + $0x8] sm:$0xff]
        %v268 = vld [vmem:[%s3] sm:$0xf]
        %v269 = vld [vmem:[%s3 + $0x4] sm:$0xf]
        %v270 = vld [vmem:[%s3 + $0x8] sm:$0xf]
        %v271 = vld [vmem:[%s3 + $0xc] sm:$0xf]
        %v272 = vld [vmem:[%s3 + $0x10] sm:$0xf]
        %v273 = vld [vmem:[%s3 + $0x14] sm:$0xf]
        %v274 = vld [vmem:[%s3 + $0x18] sm:$0xf]
        %v275 = vld [vmem:[%s3 + $0x1c] sm:$0xf]
        %v276 = vld [vmem:[%s4] sm:$0xff]
        %v277 = vld [vmem:[%s4 + $0x8] sm:$0xff]
        %v278 = vld [vmem:[%s4 + $0x10] sm:$0xff]
        %v279 = vld [vmem:[%s4 + $0x18] sm:$0xff]
        %v280 = vld [vmem:[%s4 + $0x20] sm:$0xff]
        %v281 = vld [vmem:[%s4 + $0x28] sm:$0xff]
        %v282 = vld [vmem:[%s4 + $0x30] sm:$0xff]
        %v283 = vld [vmem:[%s4 + $0x38] sm:$0xff]
        %v284 = vld [vmem:[%s234] sm:$0xff]
        %v285 = vld [vmem:[%s234 + $0x8] sm:$0xff]
        %v286 = vld [vmem:[%s234 + $0x10] sm:$0xff]
        %v287 = vld [vmem:[%s234 + $0x18] sm:$0xff]
        %v288 = vld [vmem:[%s234 + $0x20] sm:$0xff]
        %v289 = vld [vmem:[%s234 + $0x28] sm:$0xff]
        %v290 = vld [vmem:[%s234 + $0x30] sm:$0xff]
        %v291 = vld [vmem:[%s234 + $0x38] sm:$0xff]
        %v292 = vld [vmem:[%s234 + $0x40] sm:$0xff]
        %v293 = vld [vmem:[%s234 + $0x48] sm:$0xff]
        %v294 = vld [vmem:[%s234 + $0x50] sm:$0xff]
        %v295 = vld [vmem:[%s234 + $0x58] sm:$0xff]
        %v296 = vld [vmem:[%s234 + $0x60] sm:$0xff]
        %v297 = vld [vmem:[%s234 + $0x68] sm:$0xff]
        %v298 = vld [vmem:[%s234 + $0x70] sm:$0xff]
        %v299 = vld [vmem:[%s234 + $0x78] sm:$0xff]
        %v300 = vpack.c.bf16 %v286, %v284
        %v301 = vpack.c.bf16 %v287, %v285
        %v302 = vpack.c.bf16 %v290, %v288
        %v303 = vpack.c.bf16 %v291, %v289
        %v304 = vpack.c.bf16 %v294, %v292
        %v305 = vpack.c.bf16 %v295, %v293
        %v306 = vpack.c.bf16 %v298, %v296
        %v307 = vpack.c.bf16 %v299, %v297
        %309 = vset.pattern.permute.xlu0 0
        %310 = vperm.xlu0 %309, %v266
        %v311 = vpop.permute.xlu0 %310
        %314 = vset.pattern.permute.xlu0 0
        %315 = vperm.xlu0 %314, %v267
        %v316 = vpop.permute.xlu0 %315
        %v320 = vunpack.c.l.b16 %v264
        %v321 = vunpack.c.l.b16 %v265
        %v322 = vpack.c.b16 %v321, %v320
        %vm323 = vcmask 523264
        %v325 = vsel %vm323, %v322, 0
        %327 = vmatprep.subr.bf16.mxu0 0
        %328 = vmatpush1.bf16.msra.mxu0 0
        %329 = vmatprep.subr.bf16.mxu0 0
        %330 = vmatpush1.bf16.msra.mxu0 0
        %331 = vmatprep.subr.bf16.mxu0 0
        %332 = vmatpush1.bf16.msra.mxu0 0
        %333 = vmatprep.subr.bf16.mxu0 0
        %334 = vmatpush1.bf16.msra.mxu0 0
        %335 = vmatprep.subr.bf16.mxu0 %v307
        %336 = vmatpush1.bf16.msra.mxu0 %v306
        %337 = vmatprep.subr.bf16.mxu0 %v305
        %338 = vmatpush1.bf16.msra.mxu0 %v304
        %339 = vmatprep.subr.bf16.mxu0 %v303
        %340 = vmatpush1.bf16.msra.mxu0 %v302
        %341 = vmatprep.subr.bf16.mxu0 %v301
        %342 = vmatpush1.bf16.msra.mxu0 %v300
        %343 = vmatprep.subr.bf16.mxu0 0
        %344 = vmatpush2.bf16.msra.mxu0 0
        %345 = vmatprep.subr.bf16.mxu0 0
        %346 = vmatpush2.bf16.msra.mxu0 0
        %347 = vmatprep.subr.bf16.mxu0 0
        %348 = vmatpush2.bf16.msra.mxu0 0
        %349 = vmatprep.subr.bf16.mxu0 0
        %350 = vmatpush2.bf16.msra.mxu0 0
        %351 = vmatprep.subr.bf16.mxu0 0
        %352 = vmatpush2.bf16.msra.mxu0 0
        %353 = vmatprep.subr.bf16.mxu0 0
        %354 = vmatpush2.bf16.msra.mxu0 0
        %355 = vmatprep.subr.bf16.mxu0 0
        %356 = vmatpush2.bf16.msra.mxu0 0
        %357 = vmatprep.subr.bf16.mxu0 0
        %358 = vmatpush2.bf16.msra.mxu0 0
        %359 = vmatprep.mubr.bf16.mxu0 0
        %360 = vmatmul.mubr.bf16.gmra.mxu0 %v325
        %v361 = vpop.f32.mrf.mxu0
        %v362 = vadd.f32 %v311, %v361
        %v363 = vpop.f32.mrf.mxu0
        %v364 = vadd.f32 %v311, %v363
        %v365 = vpop.f32.mrf.mxu0
        %v366 = vadd.f32 %v316, %v365
        %v367 = vpop.f32.mrf.mxu0
        %v368 = vadd.f32 %v316, %v367
        %369 = vdwg.mxu0
        %v370 = vmul.f32 %v362, 0.1
        %v371 = vmul.f32 %v364, 0.1
        %v372 = vmul.f32 %v366, 0.1
        %v373 = vmul.f32 %v368, 0.1
        %v374 = vmax.f32 %v362, %v370
        %v375 = vmax.f32 %v364, %v371
        %v376 = vmax.f32 %v366, %v372
        %v377 = vmax.f32 %v368, %v373
        %v378 = vpack.c.bf16 %v376, %v374
        %v379 = vpack.c.bf16 %v377, %v375
        %381 = vset.pattern.permute.xlu0 0
        %382 = vperm.xlu0 %381, %v276
        %v383 = vpop.permute.xlu0 %382
        %386 = vset.pattern.permute.xlu0 0
        %387 = vperm.xlu0 %386, %v277
        %v388 = vpop.permute.xlu0 %387
        %391 = vset.pattern.permute.xlu0 0
        %392 = vperm.xlu0 %391, %v278
        %v393 = vpop.permute.xlu0 %392
        %396 = vset.pattern.permute.xlu0 0
        %397 = vperm.xlu0 %396, %v279
        %v398 = vpop.permute.xlu0 %397
        %401 = vset.pattern.permute.xlu0 0
        %402 = vperm.xlu0 %401, %v280
        %v403 = vpop.permute.xlu0 %402
        %406 = vset.pattern.permute.xlu0 0
        %407 = vperm.xlu0 %406, %v281
        %v408 = vpop.permute.xlu0 %407
        %411 = vset.pattern.permute.xlu0 0
        %412 = vperm.xlu0 %411, %v282
        %v413 = vpop.permute.xlu0 %412
        %416 = vset.pattern.permute.xlu0 0
        %417 = vperm.xlu0 %416, %v283
        %v418 = vpop.permute.xlu0 %417
        %v428 = vunpack.c.l.b16 %v268
        %v429 = vunpack.c.l.b16 %v269
        %v430 = vunpack.c.l.b16 %v270
        %v431 = vunpack.c.l.b16 %v271
        %v432 = vunpack.c.l.b16 %v272
        %v433 = vunpack.c.l.b16 %v273
        %v434 = vunpack.c.l.b16 %v274
        %v435 = vunpack.c.l.b16 %v275
        %v436 = vpack.c.b16 %v429, %v428
        %v437 = vpack.c.b16 %v431, %v430
        %v438 = vpack.c.b16 %v433, %v432
        %v439 = vpack.c.b16 %v435, %v434
        %vm440 = vcmask 130048
        %v442 = vsel %vm440, %v436, 0
        %v445 = vsel %vm440, %v437, 0
        %v448 = vsel %vm440, %v438, 0
        %v451 = vsel %vm440, %v439, 0
        %453 = vmatprep.subr.bf16.mxu0 0
        %454 = vmatpush1.bf16.msra.mxu0 0
        %455 = vmatprep.subr.bf16.mxu0 0
        %456 = vmatpush1.bf16.msra.mxu0 0
        %457 = vmatprep.subr.bf16.mxu0 0
        %458 = vmatpush1.bf16.msra.mxu0 0
        %459 = vmatprep.subr.bf16.mxu0 0
        %460 = vmatpush1.bf16.msra.mxu0 0
        %461 = vmatprep.subr.bf16.mxu0 0
        %462 = vmatpush1.bf16.msra.mxu0 0
        %463 = vmatprep.subr.bf16.mxu0 0
        %464 = vmatpush1.bf16.msra.mxu0 0
        %465 = vmatprep.subr.bf16.mxu0 0
        %466 = vmatpush1.bf16.msra.mxu0 0
        %467 = vmatprep.subr.bf16.mxu0 %v379
        %468 = vmatpush1.bf16.msra.mxu0 %v378
        %469 = vmatprep.subr.bf16.mxu0 0
        %470 = vmatpush2.bf16.msra.mxu0 0
        %471 = vmatprep.subr.bf16.mxu0 0
        %472 = vmatpush2.bf16.msra.mxu0 0
        %473 = vmatprep.subr.bf16.mxu0 0
        %474 = vmatpush2.bf16.msra.mxu0 0
        %475 = vmatprep.subr.bf16.mxu0 0
        %476 = vmatpush2.bf16.msra.mxu0 0
        %477 = vmatprep.subr.bf16.mxu0 0
        %478 = vmatpush2.bf16.msra.mxu0 0
        %479 = vmatprep.subr.bf16.mxu0 0
        %480 = vmatpush2.bf16.msra.mxu0 0
        %481 = vmatprep.subr.bf16.mxu0 0
        %482 = vmatpush2.bf16.msra.mxu0 0
        %483 = vmatprep.subr.bf16.mxu0 0
        %484 = vmatpush2.bf16.msra.mxu0 0
        %485 = vmatprep.mubr.bf16.mxu0 0
        %486 = vmatmul.mubr.bf16.gmra.mxu0 %v442
        %v487 = vpop.f32.mrf.mxu0
        %v488 = vadd.f32 %v383, %v487
        %v489 = vpop.f32.mrf.mxu0
        %v490 = vadd.f32 %v383, %v489
        %v491 = vpop.f32.mrf.mxu0
        %v492 = vadd.f32 %v388, %v491
        %v493 = vpop.f32.mrf.mxu0
        %v494 = vadd.f32 %v388, %v493
        %495 = vmatprep.mubr.bf16.mxu0 0
        %496 = vmatmul.mubr.bf16.gmra.mxu0 %v445
        %v497 = vpop.f32.mrf.mxu0
        %v498 = vadd.f32 %v393, %v497
        %v499 = vpop.f32.mrf.mxu0
        %v500 = vadd.f32 %v393, %v499
        %v501 = vpop.f32.mrf.mxu0
        %v502 = vadd.f32 %v398, %v501
        %v503 = vpop.f32.mrf.mxu0
        %v504 = vadd.f32 %v398, %v503
        %505 = vmatprep.mubr.bf16.mxu0 0
        %506 = vmatmul.mubr.bf16.gmra.mxu0 %v448
        %v507 = vpop.f32.mrf.mxu0
        %v508 = vadd.f32 %v403, %v507
        %v509 = vpop.f32.mrf.mxu0
        %v510 = vadd.f32 %v403, %v509
        %v511 = vpop.f32.mrf.mxu0
        %v512 = vadd.f32 %v408, %v511
        %v513 = vpop.f32.mrf.mxu0
        %v514 = vadd.f32 %v408, %v513
        %515 = vmatprep.mubr.bf16.mxu0 0
        %516 = vmatmul.mubr.bf16.gmra.mxu0 %v451
        %v517 = vpop.f32.mrf.mxu0
        %v518 = vadd.f32 %v413, %v517
        %v519 = vpop.f32.mrf.mxu0
        %v520 = vadd.f32 %v413, %v519
        %v521 = vpop.f32.mrf.mxu0
        %v522 = vadd.f32 %v418, %v521
        %v523 = vpop.f32.mrf.mxu0
        %v524 = vadd.f32 %v418, %v523
        %525 = vdwg.mxu0
        %v526 = vmul.f32 %v488, 0.1
        %v527 = vmul.f32 %v490, 0.1
        %v528 = vmul.f32 %v492, 0.1
        %v529 = vmul.f32 %v494, 0.1
        %v530 = vmul.f32 %v498, 0.1
        %v531 = vmul.f32 %v500, 0.1
        %v532 = vmul.f32 %v502, 0.1
        %v533 = vmul.f32 %v504, 0.1
        %v534 = vmul.f32 %v508, 0.1
        %v535 = vmul.f32 %v510, 0.1
        %v536 = vmul.f32 %v512, 0.1
        %v537 = vmul.f32 %v514, 0.1
        %v538 = vmul.f32 %v518, 0.1
        %v539 = vmul.f32 %v520, 0.1
        %v540 = vmul.f32 %v522, 0.1
        %v541 = vmul.f32 %v524, 0.1
        %v542 = vmax.f32 %v488, %v526
        %v543 = vmax.f32 %v490, %v527
        %v544 = vmax.f32 %v492, %v528
        %v545 = vmax.f32 %v494, %v529
        %v546 = vmax.f32 %v498, %v530
        %v547 = vmax.f32 %v500, %v531
        %v548 = vmax.f32 %v502, %v532
        %v549 = vmax.f32 %v504, %v533
        %v550 = vmax.f32 %v508, %v534
        %v551 = vmax.f32 %v510, %v535
        %v552 = vmax.f32 %v512, %v536
        %v553 = vmax.f32 %v514, %v537
        %v554 = vmax.f32 %v518, %v538
        %v555 = vmax.f32 %v520, %v539
        %v556 = vmax.f32 %v522, %v540
        %v557 = vmax.f32 %v524, %v541
        %v558 = vpack.c.bf16 %v544, %v542
        %v559 = vpack.c.bf16 %v545, %v543
        %v560 = vpack.c.bf16 %v548, %v546
        %v561 = vpack.c.bf16 %v549, %v547
        %v562 = vpack.c.bf16 %v552, %v550
        %v563 = vpack.c.bf16 %v553, %v551
        %v564 = vpack.c.bf16 %v556, %v554
        %v565 = vpack.c.bf16 %v557, %v555
        %v574 = vunpack.c.l.b16 %v558
        %v575 = vunpack.c.l.b16 %v559
        %v576 = vunpack.c.h.b16 %v558
        %v577 = vunpack.c.h.b16 %v559
        %v578 = vunpack.c.l.b16 %v560
        %v579 = vunpack.c.l.b16 %v561
        %v580 = vunpack.c.h.b16 %v560
        %v581 = vunpack.c.h.b16 %v561
        %v582 = vunpack.c.l.b16 %v562
        %v583 = vunpack.c.l.b16 %v563
        %v584 = vunpack.c.h.b16 %v562
        %v585 = vunpack.c.h.b16 %v563
        %v586 = vunpack.c.l.b16 %v564
        %v587 = vunpack.c.l.b16 %v565
        %v588 = vunpack.c.h.b16 %v564
        %v589 = vunpack.c.h.b16 %v565
        %v590 = vpack.c.b16 %v575, %v574
        %v591 = vpack.c.b16 %v577, %v576
        %v592 = vpack.c.b16 %v579, %v578
        %v593 = vpack.c.b16 %v581, %v580
        %v594 = vpack.c.b16 %v583, %v582
        %v595 = vpack.c.b16 %v585, %v584
        %v596 = vpack.c.b16 %v587, %v586
        %v597 = vpack.c.b16 %v589, %v588
        %606 = vst [vmem:[%s260] sm:$0xff] %v590
        %607 = vst [vmem:[%s260 + $0x8] sm:$0xff] %v591
        %608 = vst [vmem:[%s260 + $0x10] sm:$0xff] %v592
        %609 = vst [vmem:[%s260 + $0x18] sm:$0xff] %v593
        %610 = vst [vmem:[%s260 + $0x20] sm:$0xff] %v594
        %611 = vst [vmem:[%s260 + $0x28] sm:$0xff] %v595
        %612 = vst [vmem:[%s260 + $0x30] sm:$0xff] %v596
        %613 = vst [vmem:[%s260 + $0x38] sm:$0xff] %v597
        %s614 = sand.u32 %s156, 1
        %s615 = scalar_lea.sflag [#allocation4], %s614
        %s616 = sand.u32 %s156, 1
        %s617 = smul.addr %s616, 64
        %s618 = scalar_lea.vmem [#allocation5], %s617
        // Predicated region
        $region45: #{tpu_custom_call.1} parent=39 // pred_check
          %p619 = pneg %p166
        $region46: #{tpu_custom_call.1} parent=39 // pred_check_branch
          %621 = sbr.rel (%p619) target = $region48
        $region47: #{tpu_custom_call.1} parent=39 // pred_region
          %s622 = smul.u32 2, %s27
          %s624 = ssub.s32 1024, 1024
          %625 = vsyncadd %s615, %s624
          %s626 = smul.addr %s26, 16
          %s627 = sadd.s32 %s622, %s626
          %s628 = smul.addr %s627, 64
          %s629 = scalar_lea.hbm %s5, %s628
          %s630 = sshll.u32 %s618, 4
          %s631 = int_to_ptr.vmem [resolvable:$true] %s630
          %636 = dma.vmem_to_hbm [thread:$0]  %s631, 1024, %s629, %s615, 128, 128, 8
        $region48: #{tpu_custom_call.1} parent=39 // pred_fallthru
          _
      $region40: #{tpu_custom_call.1} parent=5 // pred_fallthru
        _
      %p637 = scmp.le.s32.totalorder 2, %s17
      // Predicated region
      $region49: #{tpu_custom_call.1} parent=5 // pred_check
        %p638 = pneg %p637
      $region50: #{tpu_custom_call.1} parent=5 // pred_check_branch
        %640 = sbr.rel (%p638) target = $region52
      $region51: #{tpu_custom_call.1} parent=5 // pred_region
        %s641 = ssub.s32 %s17, 2
        // Predicated region
        $region53: #{tpu_custom_call.1} parent=51 // pred_check
          %p642 = pneg %p172
        $region54: #{tpu_custom_call.1} parent=51 // pred_check_branch
          %644 = sbr.rel (%p642) target = $region56
        $region55: #{tpu_custom_call.1} parent=51 // pred_region
          %s645 = sand.u32 %s157, 1
          %s646 = scalar_lea.sflag [#allocation4], %s645
          %s647 = sand.u32 %s157, 1
          %s648 = smul.addr %s647, 64
          %s649 = scalar_lea.vmem [#allocation5], %s648
          %650 = dma.done %s646, 1024
        $region56: #{tpu_custom_call.1} parent=51 // pred_fallthru
          _
      $region52: #{tpu_custom_call.1} parent=5 // pred_fallthru
        _
    $region6: #{tpu_custom_call.1} parent=1 // loop_footer
      %s21 = sadd.s32 1, %s17
    $region7: #{tpu_custom_call.1} parent=1 // loop_footer_branch
      %16 = sbr.rel target = $region3
    $region8: #{tpu_custom_call.1} parent=1 // loop_exit
      _
    %651 = vsyncpa [#allocation3], 1
    %s652 = scalar_lea.sflag [#allocation3], 1
    %653 = vsyncpa %s652, 1
    %654 = vsyncpa [#allocation4], 1
    %s655 = scalar_lea.sflag [#allocation4], 1
    %656 = vsyncpa %s655, 1

</llo_original>
